<compile_context>
chip_gen: v7x
topology: tpu7x:2x2x1
jax: 0.10.0
libtpu: 0.0.40
codegen_flags: <defaults>
</compile_context>

<pallas_src>
import numpy as np
import jax
import jax.numpy as jnp
from jax.experimental import pallas as pl
from jax.experimental.pallas import tpu as pltpu


# ----------------------------------------------------------------------------
# Batch-independent extrinsics constant (exact module algebra, done once).
# ----------------------------------------------------------------------------
def _constant_extrinsics():
    """R, T exactly as the module computes them, for a single element."""
    angle = -2.0 * np.pi / 32.0
    c, s = np.cos(angle), np.sin(angle)
    pose = np.eye(4, dtype=np.float64)
    pose[:3, :3] = np.array([[c, 0.0, s],
                             [0.0, 1.0, 0.0],
                             [-s, 0.0, c]], dtype=np.float64)
    pose[:3, 3] = np.array([0.2, 0.0, 0.0], dtype=np.float64)
    flip = np.diag([-1.0, -1.0, 1.0, 1.0])
    c2w = np.linalg.inv(pose) @ flip
    w2c = np.linalg.inv(c2w)
    R = w2c[:3, :3].T               # == torch .permute(0, 2, 1)
    T = w2c[:3, 3]
    return R.astype(np.float32), T.astype(np.float32)


_R_CONST_NP, _T_CONST_NP = _constant_extrinsics()


# ----------------------------------------------------------------------------
# Pallas kernel: intrinsics gather, single fused store, batch on lanes.
# ----------------------------------------------------------------------------
def _intrinsics_kernel(kt_ref, out_ref):
    """Gather camera intrinsics from row-major flattened K.

    kt_ref : (9, tb)  intrinsics.reshape(b, 9).T tile; sublanes are K00..K22
    out_ref: (4, tb)  packed sublanes [K00 (fx), K11 (fy), K02 (cx), K12 (cy)]
    """
    k = kt_ref[...]                                   # (9, tb)
    out_ref[...] = jnp.concatenate(
        [k[0:1, :],    # fx = K[0, 0]
         k[4:5, :],    # fy = K[1, 1]
         k[2:3, :],    # cx = K[0, 2]
         k[5:6, :]],   # cy = K[1, 2]
        axis=0)                                       # one store, (4, tb)


_LANE_TILE = 512   # multiple of 128; only used when batch > _LANE_TILE


def _pallas_intrinsics_gather(intrinsics):
    batch = intrinsics.shape[0]
    dtype = intrinsics.dtype
    kt = intrinsics.reshape(batch, 9).T               # (9, b), batch on lanes

    tb = _LANE_TILE if batch > _LANE_TILE else batch  # lane tile (full batch if small)
    grid = (pl.cdiv(batch, tb),)

    packed = pl.pallas_call(
        _intrinsics_kernel,
        out_shape=jax.ShapeDtypeStruct((4, batch), dtype),
        grid=grid,
        in_specs=[pl.BlockSpec((9, tb), lambda i: (0, i))],
        out_specs=pl.BlockSpec((4, tb), lambda i: (0, i)),
        compiler_params=pltpu.CompilerParams(
            dimension_semantics=("parallel",)),       # shards lane tiles over v7x's 2 TCs
    )(kt)

    focal = packed[0:2, :].T                          # (b, 2)
    pp = packed[2:4, :].T                             # (b, 2)
    return focal, pp


# ----------------------------------------------------------------------------
# Module wrapper (forward pass of ConfigureCamera).
# ----------------------------------------------------------------------------
def configure_camera(intrinsics, image, points):
    batch, height, width, channel = image.shape
    assert channel == 3
    assert intrinsics.shape == (batch, 3, 3)
    assert points.shape == (batch, height, width, 3)  # only its batch dim is used

    # Data-dependent part: intrinsics gather (Pallas kernel).
    focal, pp = _pallas_intrinsics_gather(intrinsics)

    # Batch-independent extrinsics: broadcast of a compile-time constant.
    R = jnp.broadcast_to(jnp.asarray(_R_CONST_NP), (batch, 3, 3))
    T = jnp.broadcast_to(jnp.asarray(_T_CONST_NP), (batch, 3))

    image_size = jnp.tile(jnp.array([[height, width]], jnp.int32), (batch, 1))

    # TODO(synk): PerspectiveCameras is a pytorch3d container object; its
    # tensor fields are returned as a plain dict instead.
    return {
        "focal_length": focal,        # (b, 2)
        "principal_point": pp,        # (b, 2)
        "R": R,                       # (b, 3, 3)
        "T": T,                       # (b, 3)
        "image_size": image_size,     # (b, 2)
        "in_ndc": False,
    }


# ----------------------------------------------------------------------------
# Reference (full double-inversion path, numpy float64) and self-test.
# ----------------------------------------------------------------------------
def _reference(intrinsics, image, points):
    batch = image.shape[0]
    angle = -2.0 * np.pi / 32.0
    c, s = np.cos(angle), np.sin(angle)
    pose = np.tile(np.eye(4, dtype=np.float64), (batch, 1, 1))
    pose[:, :3, :3] = np.array([[c, 0.0, s], [0.0, 1.0, 0.0], [-s, 0.0, c]])
    pose[:, :3, 3] = np.array([0.2, 0.0, 0.0])
    F = np.diag([-1.0, -1.0, 1.0, 1.0])[None]
    c2w = np.linalg.inv(pose) @ F
    w2c = np.linalg.inv(c2w)
    R = np.transpose(w2c[:, :3, :3], (0, 2, 1))
    T = w2c[:, :3, 3]
    Kn = np.asarray(intrinsics)
    focal = np.stack([Kn[:, 0, 0], Kn[:, 1, 1]], axis=-1)
    pp = Kn[:, :2, 2]
    return R, T, focal, pp


if __name__ == "__main__":
    key = jax.random.PRNGKey(0)
    k1, k2, k3 = jax.random.split(key, 3)
    batch, h, w = 2, 16, 16

    image = jax.random.uniform(k1, (batch, h, w, 3), jnp.float32)
    points = jax.random.normal(k2, (batch, h, w, 3), jnp.float32)

    params = jax.random.uniform(k3, (batch, 4), jnp.float32, 50.0, 200.0)
    K = jnp.zeros((batch, 3, 3), jnp.float32)
    K = K.at[:, 0, 0].set(params[:, 0])   # fx
    K = K.at[:, 1, 1].set(params[:, 1])   # fy
    K = K.at[:, 0, 2].set(params[:, 2])   # cx
    K = K.at[:, 1, 2].set(params[:, 3])   # cy
    K = K.at[:, 2, 2].set(1.0)

    out = configure_camera(K, image, points)
    jax.block_until_ready(out)

    R_ref, T_ref, f_ref, pp_ref = _reference(K, image, points)
    assert np.allclose(np.asarray(out["R"]), R_ref, atol=1e-5)
    assert np.allclose(np.asarray(out["T"]), T_ref, atol=1e-5)
    assert np.allclose(np.asarray(out["focal_length"]), f_ref, atol=1e-5)
    assert np.allclose(np.asarray(out["principal_point"]), pp_ref, atol=1e-5)
    assert np.asarray(out["image_size"]).tolist() == [[h, w]] * batch
    print("KERNEL_OK")
</pallas_src>

<mosaic_0001>
module attributes {stable_mosaic.version = 11 : i64} {
  func.func @_intrinsics_kernel(%arg0: i32, %arg1: memref<9x2xf32, #tpu.memory_space<vmem>>, %arg2: memref<4x2xf32, #tpu.memory_space<vmem>>) attributes {dimension_semantics = [#tpu.dimension_semantics<parallel>], iteration_bounds = array<i64: 1>, scalar_prefetch = 0 : i64, scratch_operands = 0 : i64, tpu.core_type = #tpu.core_type<tc>, window_params = [{transform_indices = @transform_0, window_bounds = array<i64: 9, 2>}, {transform_indices = @transform_1, window_bounds = array<i64: 4, 2>}]} {
    %c0 = arith.constant 0 : index
    %c0_0 = arith.constant 0 : index
    %0 = vector.load %arg1[%c0, %c0_0] : memref<9x2xf32, #tpu.memory_space<vmem>>, vector<9x2xf32>
    %1 = vector.extract_strided_slice %0 {offsets = [0, 0], sizes = [1, 2], strides = [1, 1]} : vector<9x2xf32> to vector<1x2xf32>
    %2 = vector.extract_strided_slice %0 {offsets = [4, 0], sizes = [1, 2], strides = [1, 1]} : vector<9x2xf32> to vector<1x2xf32>
    %3 = vector.extract_strided_slice %0 {offsets = [2, 0], sizes = [1, 2], strides = [1, 1]} : vector<9x2xf32> to vector<1x2xf32>
    %4 = vector.extract_strided_slice %0 {offsets = [5, 0], sizes = [1, 2], strides = [1, 1]} : vector<9x2xf32> to vector<1x2xf32>
    %5 = tpu.concatenate %1, %2, %3, %4 in 0 : vector<1x2xf32>, vector<1x2xf32>, vector<1x2xf32>, vector<1x2xf32> -> vector<4x2xf32>
    %c0_1 = arith.constant 0 : index
    %c0_2 = arith.constant 0 : index
    %6 = vector.load %arg2[%c0_1, %c0_2] : memref<4x2xf32, #tpu.memory_space<vmem>>, vector<4x2xf32>
    tpu.vector_store %arg2[%c0_1, %c0_2], %5 {strides = array<i32>} : memref<4x2xf32, #tpu.memory_space<vmem>>, vector<4x2xf32>,
    return
  }
  func.func @transform_0(%arg0: i32) -> (i32, i32) {
    %c0_i32 = arith.constant 0 : i32
    %c0_i32_0 = arith.constant 0 : i32
    return %c0_i32, %arg0 : i32, i32
  }
  func.func @transform_1(%arg0: i32) -> (i32, i32) {
    %c0_i32 = arith.constant 0 : i32
    %c0_i32_0 = arith.constant 0 : i32
    return %c0_i32, %arg0 : i32, i32
  }
}

</mosaic_0001>

<llo_original>
// kernel: tpu_custom_call.1
$region0: #{tpu_custom_call.1}
  #allocation0 [shape = 'u32[]', space=smem, size = 0x4, offset = 0x4, fixed_abs, tag = 'smem constant byte address 0x4 - core index']
  #allocation1 [shape = 'u32[144,128]{1,0:T(1,128)}', space=vmem, size = 0x12000, scoped, tag = 'internal scratch']
  %s0 = inlined_call_operand.vmem [shape: f32[9,2], index: 0, kind: input, shape index: {}]
  %s1 = inlined_call_operand.vmem [shape: f32[4,2], index: 1, kind: output, shape index: {}]
  %s2 = sld [smem:[#allocation0]]
  $region14: #{tpu_custom_call.1} parent=0
    _
  %s4 = ssub.s32 1, %s2
  %s5 = scalar_select 0, %s4, %s2
  // Predicated region
  $region2: #{tpu_custom_call.1} parent=0 // pred_check
    _
  $region3: #{tpu_custom_call.1} parent=0 // pred_check_branch
    %7 = sbr.rel (0) target = $region5
  $region4: #{tpu_custom_call.1} parent=0 // pred_region
    _
  $region5: #{tpu_custom_call.1} parent=0 // pred_fallthru
    _
  %v8 = vld [vmem:[%s0] sm:$0xff]
  %v10 = vrot.slane %v8, 3
  %v12 = vrot.slane %v8, 2
  %vm14 = vcmask 1040384
  %v15 = vsel %vm14, %v8, %v10
  %vm16 = vcmask 1041408
  %v17 = vsel %vm16, %v15, %v8
  %vm18 = vcmask 1042432
  %v19 = vsel %vm18, %v17, %v12
  %vm20 = vcmask 11264
  %21 = vst.msk [vmem:[%s1] sm:$0xf] %vm20, %v19
  // Predicated region
  $region6: #{tpu_custom_call.1} parent=0 // pred_check
    _
  $region7: #{tpu_custom_call.1} parent=0 // pred_check_branch
    %23 = sbr.rel (0) target = $region9
  $region8: #{tpu_custom_call.1} parent=0 // pred_region
    _
  $region9: #{tpu_custom_call.1} parent=0 // pred_fallthru
    _
  // Predicated region
  $region10: #{tpu_custom_call.1} parent=0 // pred_check
    _
  $region11: #{tpu_custom_call.1} parent=0 // pred_check_branch
    %25 = sbr.rel (0) target = $region13
  $region12: #{tpu_custom_call.1} parent=0 // pred_region
    _
  $region13: #{tpu_custom_call.1} parent=0 // pred_fallthru
    _

</llo_original>
